<compile_context>
chip_gen: v6e
topology: v6e:2x2x1
jax: 0.10.0
libtpu: 0.0.40
codegen_flags: <defaults>
</compile_context>

<pallas_src>
import jax
import jax.numpy as jnp
from jax import lax
from jax.experimental import pallas as pl
from jax.experimental.pallas import tpu as pltpu

BACKBONE_DIM = 1152
HIDDEN_DIMS = (1024, 128, 64, 16)   # Linear chain 1152->1024->128->64->16
OUT_DIM = HIDDEN_DIMS[-1]


def _head_kernel(x_ref, w_ref, b_ref, o_ref):
    # x tile: (tb, 1152). Compute in f32 (safe on v5e: no bf16 VALU/EUP there).
    x = x_ref[...].astype(jnp.float32)

    # torch.nn.functional.normalize(x, dim=-1): x / max(||x||_2, 1e-12).
    # rsqrt(max(sumsq, 1e-24)) == 1 / max(sqrt(sumsq), 1e-12); applied AFTER the
    # matmul so we never write a normalized (tb,1152) copy into VMEM.
    sumsq = jnp.sum(x * x, axis=-1, keepdims=True)
    scale = lax.rsqrt(jnp.maximum(sumsq, 1e-24))        # EUP slot, ~free

    # Pre-composed head: one (tb,1152)x(1152,16) MXU matmul + bias.
    # TODO(synk): training-mode Dropout(0.5/0.2) masking is not implemented.
    h = jnp.dot(x, w_ref[...], preferred_element_type=jnp.float32)
    o_ref[...] = (h * scale + b_ref[...]).astype(o_ref.dtype)


class AestheticHeadParams:
    """Deterministic synthetic weights matching the PyTorch Linear shapes.

    Per-layer weights are stored as (in, out) so the math is x @ W + b; the
    whole linear chain is additionally pre-composed (offline, one-time) into a
    single (1152, 16) weight + (1, 16) bias used by the fused kernel.
    """

    def __init__(self, key: jax.Array, dtype=jnp.float32):
        dims = (BACKBONE_DIM,) + HIDDEN_DIMS
        keys = jax.random.split(key, 2 * (len(dims) - 1))
        self.weights = []
        self.biases = []
        for li in range(len(dims) - 1):
            fan_in, fan_out = dims[li], dims[li + 1]
            bound = 1.0 / (fan_in ** 0.5)
            w = jax.random.uniform(keys[2 * li], (fan_in, fan_out), dtype,
                                   -bound, bound)
            b = jax.random.uniform(keys[2 * li + 1], (1, fan_out), dtype,
                                   -bound, bound)
            self.weights.append(w)
            self.biases.append(b)

        # Offline composition in f32 at HIGHEST precision (one-time cost).
        w_comp = self.weights[0].astype(jnp.float32)
        b_comp = self.biases[0].astype(jnp.float32)
        for w, b in zip(self.weights[1:], self.biases[1:]):
            wf = w.astype(jnp.float32)
            w_comp = jnp.dot(w_comp, wf, precision=lax.Precision.HIGHEST)
            b_comp = jnp.dot(b_comp, wf, precision=lax.Precision.HIGHEST)
            b_comp = b_comp + b.astype(jnp.float32)
        self.w_comp = w_comp    # (1152, 16)
        self.b_comp = b_comp    # (1, 16)


def _round_up(n: int, m: int) -> int:
    return ((n + m - 1) // m) * m


def aesthetic_head_forward(x: jax.Array, params: AestheticHeadParams,
                           *, block_b: int = 1024) -> jax.Array:
    """Fused forward pass of AestheticPredictorV2p5Head. Returns (B, 16)."""
    B, D = x.shape
    assert D == BACKBONE_DIM, f"expected last dim {BACKBONE_DIM}, got {D}"
    w_comp, b_comp = params.w_comp, params.b_comp

    # Batch tile: biggest 8-aligned tile <= block_b, but sized so any batch
    # with more than one sublane-row produces >= 2 grid steps (keeps both v7x
    # TensorCores busy via the "parallel" grid axis).
    if B <= 8:
        tb = B                                        # full-array block
    else:
        tb = min(block_b, _round_up((B + 1) // 2, 8))
    grid = (pl.cdiv(B, tb),)

    in_specs = [
        pl.BlockSpec((tb, BACKBONE_DIM), lambda i: (i, 0)),        # activations
        pl.BlockSpec((BACKBONE_DIM, OUT_DIM), lambda i: (0, 0)),   # composed W (~72 KB)
        pl.BlockSpec((1, OUT_DIM), lambda i: (0, 0)),              # composed bias
    ]
    out_spec = pl.BlockSpec((tb, OUT_DIM), lambda i: (i, 0))

    return pl.pallas_call(
        _head_kernel,
        out_shape=jax.ShapeDtypeStruct((B, OUT_DIM), x.dtype),
        grid_spec=pltpu.PrefetchScalarGridSpec(
            num_scalar_prefetch=0,
            grid=grid,
            in_specs=in_specs,
            out_specs=out_spec,
        ),
        compiler_params=pltpu.CompilerParams(
            dimension_semantics=("parallel",),
            # tb=1024 f32: ~9.5 MB double-buffered x tiles + ~150 KB weights;
            # 40 MiB leaves headroom everywhere (v7x has 64 MiB physical).
            vmem_limit_bytes=40 * 1024 * 1024,
        ),
    )(x, w_comp, b_comp)


def reference_forward(x: jax.Array, params: AestheticHeadParams) -> jax.Array:
    """Plain-JAX reference with the original layer-by-layer torch semantics."""
    h = x.astype(jnp.float32)
    norm = jnp.sqrt(jnp.sum(h * h, axis=-1, keepdims=True))
    h = h / jnp.maximum(norm, 1e-12)
    for w, b in zip(params.weights, params.biases):
        h = jnp.dot(h, w.astype(jnp.float32),
                    precision=lax.Precision.HIGHEST) + b.astype(jnp.float32)
    return h.astype(x.dtype)


if __name__ == "__main__":
    key = jax.random.PRNGKey(0)
    kp, kx_small, kx_big = jax.random.split(key, 3)

    params = AestheticHeadParams(kp)

    # Tolerances are relaxed vs. the layer-by-layer reference because the
    # kernel uses the pre-composed weight and default MXU precision (shift is
    # well under 1e-3 absolute for this head).
    ATOL, RTOL = 1e-3, 1e-2

    # Small-batch case (single full-array block, grid=(1,)).
    x_small = jax.random.normal(kx_small, (2, BACKBONE_DIM), jnp.float32)
    out_small = aesthetic_head_forward(x_small, params)
    jax.block_until_ready(out_small)
    ref_small = reference_forward(x_small, params)
    assert out_small.shape == (2, OUT_DIM)
    assert jnp.allclose(out_small, ref_small, atol=ATOL, rtol=RTOL)

    # Larger batch exercises the tiled / pipelined / multi-step path
    # (B=512 -> tb=256, grid=(2,)).
    x_big = jax.random.normal(kx_big, (512, BACKBONE_DIM), jnp.float32)
    out_big = aesthetic_head_forward(x_big, params)
    jax.block_until_ready(out_big)
    ref_big = reference_forward(x_big, params)
    assert jnp.allclose(out_big, ref_big, atol=ATOL, rtol=RTOL)

    print("KERNEL_OK")
</pallas_src>

<mosaic_0001>
module attributes {stable_mosaic.version = 11 : i64} {
  func.func @_head_kernel(%arg0: i32, %arg1: memref<2x1152xf32, #tpu.memory_space<vmem>>, %arg2: memref<1152x16xf32, #tpu.memory_space<vmem>>, %arg3: memref<1x16xf32, #tpu.memory_space<vmem>>, %arg4: memref<2x16xf32, #tpu.memory_space<vmem>>) attributes {dimension_semantics = [#tpu.dimension_semantics<parallel>], iteration_bounds = array<i64: 1>, scalar_prefetch = 0 : i64, scratch_operands = 0 : i64, tpu.core_type = #tpu.core_type<tc>, window_params = [{transform_indices = @transform_0, window_bounds = array<i64: 2, 1152>}, {pipeline_mode = #tpu.pipeline_mode<synchronous>, transform_indices = @transform_1, window_bounds = array<i64: 1152, 16>}, {pipeline_mode = #tpu.pipeline_mode<synchronous>, transform_indices = @transform_2, window_bounds = array<i64: 1, 16>}, {transform_indices = @transform_3, window_bounds = array<i64: 2, 16>}]} {
    %c0 = arith.constant 0 : index
    %c0_0 = arith.constant 0 : index
    %0 = vector.load %arg1[%c0, %c0_0] : memref<2x1152xf32, #tpu.memory_space<vmem>>, vector<2x1152xf32>
    %1 = arith.mulf %0, %0 : vector<2x1152xf32>
    %cst = arith.constant dense<0.000000e+00> : vector<2xf32>
    %2 = vector.multi_reduction <add>, %1, %cst [1] : vector<2x1152xf32> to vector<2xf32>
    %3 = vector.shape_cast %2 : vector<2xf32> to vector<2x1xf32>
    %cst_1 = arith.constant 1.000000e-24 : f32
    %4 = vector.broadcast %cst_1 : f32 to vector<2x1xf32>
    %5 = arith.maximumf %3, %4 : vector<2x1xf32>
    %6 = math.rsqrt %5 : vector<2x1xf32>
    %c0_2 = arith.constant 0 : index
    %c0_3 = arith.constant 0 : index
    %7 = vector.load %arg2[%c0_2, %c0_3] : memref<1152x16xf32, #tpu.memory_space<vmem>>, vector<1152x16xf32>
    %cst_4 = arith.constant dense<0.000000e+00> : vector<2x16xf32>
    %8 = tpu.matmul %0, %7, %cst_4 {dimension_numbers = #tpu.dot_dimension_numbers<[1], [0], [0], [1], [0, 0, 1, 1], [], []>} : vector<2x1152xf32>, vector<1152x16xf32>, vector<2x16xf32> -> vector<2x16xf32>
    %9 = vector.broadcast %6 : vector<2x1xf32> to vector<2x16xf32>
    %10 = arith.mulf %8, %9 : vector<2x16xf32>
    %c0_5 = arith.constant 0 : index
    %c0_6 = arith.constant 0 : index
    %11 = vector.load %arg3[%c0_5, %c0_6] : memref<1x16xf32, #tpu.memory_space<vmem>>, vector<1x16xf32>
    %12 = vector.broadcast %11 : vector<1x16xf32> to vector<2x16xf32>
    %13 = arith.addf %10, %12 : vector<2x16xf32>
    %c0_7 = arith.constant 0 : index
    %c0_8 = arith.constant 0 : index
    %14 = vector.load %arg4[%c0_7, %c0_8] : memref<2x16xf32, #tpu.memory_space<vmem>>, vector<2x16xf32>
    tpu.vector_store %arg4[%c0_7, %c0_8], %13 {strides = array<i32>} : memref<2x16xf32, #tpu.memory_space<vmem>>, vector<2x16xf32>,
    return
  }
  func.func @transform_0(%arg0: i32) -> (i32, i32) {
    %c0_i32 = arith.constant 0 : i32
    %c0_i32_0 = arith.constant 0 : i32
    return %arg0, %c0_i32 : i32, i32
  }
  func.func @transform_1(%arg0: i32) -> (i32, i32) {
    %c0_i32 = arith.constant 0 : i32
    %c0_i32_0 = arith.constant 0 : i32
    %c0_i32_1 = arith.constant 0 : i32
    return %c0_i32, %c0_i32_0 : i32, i32
  }
  func.func @transform_2(%arg0: i32) -> (i32, i32) {
    %c0_i32 = arith.constant 0 : i32
    %c0_i32_0 = arith.constant 0 : i32
    %c0_i32_1 = arith.constant 0 : i32
    return %c0_i32, %c0_i32_0 : i32, i32
  }
  func.func @transform_3(%arg0: i32) -> (i32, i32) {
    %c0_i32 = arith.constant 0 : i32
    %c0_i32_0 = arith.constant 0 : i32
    return %arg0, %c0_i32 : i32, i32
  }
}

</mosaic_0001>

<llo_original>
// kernel: tpu_custom_call.1
$region0: #{tpu_custom_call.1}
  #allocation0 [shape = 'u32[]', space=smem, size = 0x4, offset = 0x4, fixed_abs, tag = 'smem constant byte address 0x4 - core index']
  #allocation1 [shape = 'u32[144,128]{1,0:T(1,128)}', space=vmem, size = 0x12000, scoped, tag = 'internal scratch']
  %s0 = inlined_call_operand.vmem [shape: f32[2,1152], index: 0, kind: input, shape index: {}]
  %s1 = inlined_call_operand.vmem [shape: f32[1152,16], index: 1, kind: input, shape index: {}]
  %s2 = inlined_call_operand.vmem [shape: f32[1,16], index: 2, kind: input, shape index: {}]
  %s3 = inlined_call_operand.hbm [shape: f32[2,16], index: 3, kind: output, shape index: {}]
  %s4 = sld [smem:[#allocation0]]
  $region22: #{tpu_custom_call.1} parent=0
    _
  %s6 = ssub.s32 1, %s4
  %s7 = scalar_select 0, %s6, %s4
  $region1: #{tpu_custom_call.1} parent=0
    #allocation2 [shape = 'u8[1024]{0}', space=vmem, size = 0x400, scoped, tag = 'output window, operand 0, single buffered']
    #allocation3 [shape = 's32[1]{0}', space=sflag, size = 0x4, scoped, tag = 'scoped memory for tpu_custom_call.1']
    %8 = vsyncpa [#allocation3], 0
    // Predicated region
    $region2: #{tpu_custom_call.1} parent=1 // pred_check
      _
    $region3: #{tpu_custom_call.1} parent=1 // pred_check_branch
      %10 = sbr.rel (0) target = $region5
    $region4: #{tpu_custom_call.1} parent=1 // pred_region
      _
    $region5: #{tpu_custom_call.1} parent=1 // pred_fallthru
      _
    // Predicated region
    $region6: #{tpu_custom_call.1} parent=1 // pred_check
      _
    $region7: #{tpu_custom_call.1} parent=1 // pred_check_branch
      %12 = sbr.rel (0) target = $region9
    $region8: #{tpu_custom_call.1} parent=1 // pred_region
      _
    $region9: #{tpu_custom_call.1} parent=1 // pred_fallthru
      _
    // Predicated region
    $region10: #{tpu_custom_call.1} parent=1 // pred_check
      _
    $region11: #{tpu_custom_call.1} parent=1 // pred_check_branch
      %14 = sbr.rel (0) target = $region13
    $region12: #{tpu_custom_call.1} parent=1 // pred_region
      _
    $region13: #{tpu_custom_call.1} parent=1 // pred_fallthru
      _
    %v15 = vld [vmem:[%s0] sm:$0xff]
    %v16 = vld [vmem:[%s0 + $0x8] sm:$0xff]
    %v17 = vld [vmem:[%s0 + $0x10] sm:$0x3]
    %v18 = vmul.f32 %v15, %v15
    %v19 = vmul.f32 %v16, %v16
    %v20 = vmul.f32 %v17, %v17
    %v24 = vcombine.high %v18, %v18
    %v26 = vunpack.c.l.s4 1983009808
    %v27 = vunpack.c.0.s8 %v26
    %v28 = vlaneseq
    %v29 = vshrl.u32 %v28, 7
    %v30 = vsub.s32 %v27, %v29
    %v31 = vrot.slane %v18, %v30
    %v33 = vunpack.c.l.s4 1983009808
    %v34 = vunpack.c.0.s8 %v33
    %v35 = vlaneseq
    %v36 = vshrl.u32 %v35, 7
    %v37 = vsub.s32 %v34, %v36
    %v38 = vrot.slane %v24, %v37
    %v39 = vcombine.high %v31, %v31
    %v40 = vcombine.high %v38, %v38
    %v41 = vcombine.high %v19, %v19
    %v43 = vunpack.c.l.s4 1983009808
    %v44 = vunpack.c.0.s8 %v43
    %v45 = vlaneseq
    %v46 = vshrl.u32 %v45, 7
    %v47 = vsub.s32 %v44, %v46
    %v48 = vrot.slane %v19, %v47
    %v50 = vunpack.c.l.s4 1983009808
    %v51 = vunpack.c.0.s8 %v50
    %v52 = vlaneseq
    %v53 = vshrl.u32 %v52, 7
    %v54 = vsub.s32 %v51, %v53
    %v55 = vrot.slane %v41, %v54
    %v56 = vcombine.high %v48, %v48
    %v57 = vcombine.high %v55, %v55
    %v59 = vunpack.c.l.s4 1983009808
    %v60 = vunpack.c.0.s8 %v59
    %v61 = vlaneseq
    %v62 = vshrl.u32 %v61, 7
    %v63 = vsub.s32 %v60, %v62
    %v64 = vrot.slane %v20, %v63
    %vm74 = vcmask 1041408
    %v75 = vsel %vm74, %v31, 0.0
    %v76 = vsel %vm74, %v39, 0.0
    %v77 = vadd.f32 %v75, %v76
    %v78 = vsel %vm74, %v38, 0.0
    %v79 = vadd.f32 %v77, %v78
    %v80 = vsel %vm74, %v40, 0.0
    %v81 = vadd.f32 %v79, %v80
    %v82 = vsel %vm74, %v48, 0.0
    %v83 = vadd.f32 %v81, %v82
    %v84 = vsel %vm74, %v56, 0.0
    %v85 = vadd.f32 %v83, %v84
    %v86 = vsel %vm74, %v55, 0.0
    %v87 = vadd.f32 %v85, %v86
    %v88 = vsel %vm74, %v57, 0.0
    %v89 = vadd.f32 %v87, %v88
    %v90 = vsel %vm74, %v64, 0.0
    %v91 = vadd.f32 %v89, %v90
    %92 = vadd.xlane.f32.xlu0 %v91
    %v93 = vpop.xlane.xlu0 %92
    %v94 = vmax.f32 %v93, 1e-24
    %v95 = vrsqrt.pop %v94
    %v96 = vld [vmem:[%s1] sm:$0xff]
    %v97 = vld [vmem:[%s1 + $0x8] sm:$0xff]
    %v98 = vld [vmem:[%s1 + $0x10] sm:$0xff]
    %v99 = vld [vmem:[%s1 + $0x18] sm:$0xff]
    %v100 = vld [vmem:[%s1 + $0x20] sm:$0xff]
    %v101 = vld [vmem:[%s1 + $0x28] sm:$0xff]
    %v102 = vld [vmem:[%s1 + $0x30] sm:$0xff]
    %v103 = vld [vmem:[%s1 + $0x38] sm:$0xff]
    %v104 = vld [vmem:[%s1 + $0x40] sm:$0xff]
    %v105 = vld [vmem:[%s1 + $0x48] sm:$0xff]
    %v106 = vld [vmem:[%s1 + $0x50] sm:$0xff]
    %v107 = vld [vmem:[%s1 + $0x58] sm:$0xff]
    %v108 = vld [vmem:[%s1 + $0x60] sm:$0xff]
    %v109 = vld [vmem:[%s1 + $0x68] sm:$0xff]
    %v110 = vld [vmem:[%s1 + $0x70] sm:$0xff]
    %v111 = vld [vmem:[%s1 + $0x78] sm:$0xff]
    %v112 = vld [vmem:[%s1 + $0x80] sm:$0xff]
    %v113 = vld [vmem:[%s1 + $0x88] sm:$0xff]
    %v114 = vld [vmem:[%s1 + $0x90] sm:$0xff]
    %v115 = vld [vmem:[%s1 + $0x98] sm:$0xff]
    %v116 = vld [vmem:[%s1 + $0xa0] sm:$0xff]
    %v117 = vld [vmem:[%s1 + $0xa8] sm:$0xff]
    %v118 = vld [vmem:[%s1 + $0xb0] sm:$0xff]
    %v119 = vld [vmem:[%s1 + $0xb8] sm:$0xff]
    %v120 = vld [vmem:[%s1 + $0xc0] sm:$0xff]
    %v121 = vld [vmem:[%s1 + $0xc8] sm:$0xff]
    %v122 = vld [vmem:[%s1 + $0xd0] sm:$0xff]
    %v123 = vld [vmem:[%s1 + $0xd8] sm:$0xff]
    %v124 = vld [vmem:[%s1 + $0xe0] sm:$0xff]
    %v125 = vld [vmem:[%s1 + $0xe8] sm:$0xff]
    %v126 = vld [vmem:[%s1 + $0xf0] sm:$0xff]
    %v127 = vld [vmem:[%s1 + $0xf8] sm:$0xff]
    %v128 = vld [vmem:[%s1 + $0x100] sm:$0xff]
    %v129 = vld [vmem:[%s1 + $0x108] sm:$0xff]
    %v130 = vld [vmem:[%s1 + $0x110] sm:$0xff]
    %v131 = vld [vmem:[%s1 + $0x118] sm:$0xff]
    %v132 = vld [vmem:[%s1 + $0x120] sm:$0xff]
    %v133 = vld [vmem:[%s1 + $0x128] sm:$0xff]
    %v134 = vld [vmem:[%s1 + $0x130] sm:$0xff]
    %v135 = vld [vmem:[%s1 + $0x138] sm:$0xff]
    %v136 = vld [vmem:[%s1 + $0x140] sm:$0xff]
    %v137 = vld [vmem:[%s1 + $0x148] sm:$0xff]
    %v138 = vld [vmem:[%s1 + $0x150] sm:$0xff]
    %v139 = vld [vmem:[%s1 + $0x158] sm:$0xff]
    %v140 = vld [vmem:[%s1 + $0x160] sm:$0xff]
    %v141 = vld [vmem:[%s1 + $0x168] sm:$0xff]
    %v142 = vld [vmem:[%s1 + $0x170] sm:$0xff]
    %v143 = vld [vmem:[%s1 + $0x178] sm:$0xff]
    %v144 = vld [vmem:[%s1 + $0x180] sm:$0xff]
    %v145 = vld [vmem:[%s1 + $0x188] sm:$0xff]
    %v146 = vld [vmem:[%s1 + $0x190] sm:$0xff]
    %v147 = vld [vmem:[%s1 + $0x198] sm:$0xff]
    %v148 = vld [vmem:[%s1 + $0x1a0] sm:$0xff]
    %v149 = vld [vmem:[%s1 + $0x1a8] sm:$0xff]
    %v150 = vld [vmem:[%s1 + $0x1b0] sm:$0xff]
    %v151 = vld [vmem:[%s1 + $0x1b8] sm:$0xff]
    %v152 = vld [vmem:[%s1 + $0x1c0] sm:$0xff]
    %v153 = vld [vmem:[%s1 + $0x1c8] sm:$0xff]
    %v154 = vld [vmem:[%s1 + $0x1d0] sm:$0xff]
    %v155 = vld [vmem:[%s1 + $0x1d8] sm:$0xff]
    %v156 = vld [vmem:[%s1 + $0x1e0] sm:$0xff]
    %v157 = vld [vmem:[%s1 + $0x1e8] sm:$0xff]
    %v158 = vld [vmem:[%s1 + $0x1f0] sm:$0xff]
    %v159 = vld [vmem:[%s1 + $0x1f8] sm:$0xff]
    %v160 = vld [vmem:[%s1 + $0x200] sm:$0xff]
    %v161 = vld [vmem:[%s1 + $0x208] sm:$0xff]
    %v162 = vld [vmem:[%s1 + $0x210] sm:$0xff]
    %v163 = vld [vmem:[%s1 + $0x218] sm:$0xff]
    %v164 = vld [vmem:[%s1 + $0x220] sm:$0xff]
    %v165 = vld [vmem:[%s1 + $0x228] sm:$0xff]
    %v166 = vld [vmem:[%s1 + $0x230] sm:$0xff]
    %v167 = vld [vmem:[%s1 + $0x238] sm:$0xff]
    %v168 = vld [vmem:[%s1 + $0x240] sm:$0xff]
    %v169 = vld [vmem:[%s1 + $0x248] sm:$0xff]
    %v170 = vld [vmem:[%s1 + $0x250] sm:$0xff]
    %v171 = vld [vmem:[%s1 + $0x258] sm:$0xff]
    %v172 = vld [vmem:[%s1 + $0x260] sm:$0xff]
    %v173 = vld [vmem:[%s1 + $0x268] sm:$0xff]
    %v174 = vld [vmem:[%s1 + $0x270] sm:$0xff]
    %v175 = vld [vmem:[%s1 + $0x278] sm:$0xff]
    %v176 = vld [vmem:[%s1 + $0x280] sm:$0xff]
    %v177 = vld [vmem:[%s1 + $0x288] sm:$0xff]
    %v178 = vld [vmem:[%s1 + $0x290] sm:$0xff]
    %v179 = vld [vmem:[%s1 + $0x298] sm:$0xff]
    %v180 = vld [vmem:[%s1 + $0x2a0] sm:$0xff]
    %v181 = vld [vmem:[%s1 + $0x2a8] sm:$0xff]
    %v182 = vld [vmem:[%s1 + $0x2b0] sm:$0xff]
    %v183 = vld [vmem:[%s1 + $0x2b8] sm:$0xff]
    %v184 = vld [vmem:[%s1 + $0x2c0] sm:$0xff]
    %v185 = vld [vmem:[%s1 + $0x2c8] sm:$0xff]
    %v186 = vld [vmem:[%s1 + $0x2d0] sm:$0xff]
    %v187 = vld [vmem:[%s1 + $0x2d8] sm:$0xff]
    %v188 = vld [vmem:[%s1 + $0x2e0] sm:$0xff]
    %v189 = vld [vmem:[%s1 + $0x2e8] sm:$0xff]
    %v190 = vld [vmem:[%s1 + $0x2f0] sm:$0xff]
    %v191 = vld [vmem:[%s1 + $0x2f8] sm:$0xff]
    %v192 = vld [vmem:[%s1 + $0x300] sm:$0xff]
    %v193 = vld [vmem:[%s1 + $0x308] sm:$0xff]
    %v194 = vld [vmem:[%s1 + $0x310] sm:$0xff]
    %v195 = vld [vmem:[%s1 + $0x318] sm:$0xff]
    %v196 = vld [vmem:[%s1 + $0x320] sm:$0xff]
    %v197 = vld [vmem:[%s1 + $0x328] sm:$0xff]
    %v198 = vld [vmem:[%s1 + $0x330] sm:$0xff]
    %v199 = vld [vmem:[%s1 + $0x338] sm:$0xff]
    %v200 = vld [vmem:[%s1 + $0x340] sm:$0xff]
    %v201 = vld [vmem:[%s1 + $0x348] sm:$0xff]
    %v202 = vld [vmem:[%s1 + $0x350] sm:$0xff]
    %v203 = vld [vmem:[%s1 + $0x358] sm:$0xff]
    %v204 = vld [vmem:[%s1 + $0x360] sm:$0xff]
    %v205 = vld [vmem:[%s1 + $0x368] sm:$0xff]
    %v206 = vld [vmem:[%s1 + $0x370] sm:$0xff]
    %v207 = vld [vmem:[%s1 + $0x378] sm:$0xff]
    %v208 = vld [vmem:[%s1 + $0x380] sm:$0xff]
    %v209 = vld [vmem:[%s1 + $0x388] sm:$0xff]
    %v210 = vld [vmem:[%s1 + $0x390] sm:$0xff]
    %v211 = vld [vmem:[%s1 + $0x398] sm:$0xff]
    %v212 = vld [vmem:[%s1 + $0x3a0] sm:$0xff]
    %v213 = vld [vmem:[%s1 + $0x3a8] sm:$0xff]
    %v214 = vld [vmem:[%s1 + $0x3b0] sm:$0xff]
    %v215 = vld [vmem:[%s1 + $0x3b8] sm:$0xff]
    %v216 = vld [vmem:[%s1 + $0x3c0] sm:$0xff]
    %v217 = vld [vmem:[%s1 + $0x3c8] sm:$0xff]
    %v218 = vld [vmem:[%s1 + $0x3d0] sm:$0xff]
    %v219 = vld [vmem:[%s1 + $0x3d8] sm:$0xff]
    %v220 = vld [vmem:[%s1 + $0x3e0] sm:$0xff]
    %v221 = vld [vmem:[%s1 + $0x3e8] sm:$0xff]
    %v222 = vld [vmem:[%s1 + $0x3f0] sm:$0xff]
    %v223 = vld [vmem:[%s1 + $0x3f8] sm:$0xff]
    %v224 = vld [vmem:[%s1 + $0x400] sm:$0xff]
    %v225 = vld [vmem:[%s1 + $0x408] sm:$0xff]
    %v226 = vld [vmem:[%s1 + $0x410] sm:$0xff]
    %v227 = vld [vmem:[%s1 + $0x418] sm:$0xff]
    %v228 = vld [vmem:[%s1 + $0x420] sm:$0xff]
    %v229 = vld [vmem:[%s1 + $0x428] sm:$0xff]
    %v230 = vld [vmem:[%s1 + $0x430] sm:$0xff]
    %v231 = vld [vmem:[%s1 + $0x438] sm:$0xff]
    %v232 = vld [vmem:[%s1 + $0x440] sm:$0xff]
    %v233 = vld [vmem:[%s1 + $0x448] sm:$0xff]
    %v234 = vld [vmem:[%s1 + $0x450] sm:$0xff]
    %v235 = vld [vmem:[%s1 + $0x458] sm:$0xff]
    %v236 = vld [vmem:[%s1 + $0x460] sm:$0xff]
    %v237 = vld [vmem:[%s1 + $0x468] sm:$0xff]
    %v238 = vld [vmem:[%s1 + $0x470] sm:$0xff]
    %v239 = vld [vmem:[%s1 + $0x478] sm:$0xff]
    %v243 = vcombine.high %v15, %v15
    %v245 = vunpack.c.l.s4 1983009808
    %v246 = vunpack.c.0.s8 %v245
    %v247 = vlaneseq
    %v248 = vshrl.u32 %v247, 7
    %v249 = vsub.s32 %v246, %v248
    %v250 = vrot.slane %v15, %v249
    %v252 = vunpack.c.l.s4 1983009808
    %v253 = vunpack.c.0.s8 %v252
    %v254 = vlaneseq
    %v255 = vshrl.u32 %v254, 7
    %v256 = vsub.s32 %v253, %v255
    %v257 = vrot.slane %v243, %v256
    %v258 = vcombine.high %v250, %v250
    %v259 = vcombine.high %v257, %v257
    %v260 = vcombine.high %v16, %v16
    %v262 = vunpack.c.l.s4 1983009808
    %v263 = vunpack.c.0.s8 %v262
    %v264 = vlaneseq
    %v265 = vshrl.u32 %v264, 7
    %v266 = vsub.s32 %v263, %v265
    %v267 = vrot.slane %v16, %v266
    %v269 = vunpack.c.l.s4 1983009808
    %v270 = vunpack.c.0.s8 %v269
    %v271 = vlaneseq
    %v272 = vshrl.u32 %v271, 7
    %v273 = vsub.s32 %v270, %v272
    %v274 = vrot.slane %v260, %v273
    %v275 = vcombine.high %v267, %v267
    %v276 = vcombine.high %v274, %v274
    %v278 = vunpack.c.l.s4 1983009808
    %v279 = vunpack.c.0.s8 %v278
    %v280 = vlaneseq
    %v281 = vshrl.u32 %v280, 7
    %v282 = vsub.s32 %v279, %v281
    %v283 = vrot.slane %v17, %v282
    %293 = vmatprep.subr.mxu0 0.0
    %294 = vmatpush1.msra.mxu0 %v111
    %295 = vmatprep.subr.mxu0 0.0
    %296 = vmatpush1.msra.mxu0 %v110
    %297 = vmatprep.subr.mxu0 0.0
    %298 = vmatpush1.msra.mxu0 %v109
    %299 = vmatprep.subr.mxu0 0.0
    %300 = vmatpush1.msra.mxu0 %v108
    %301 = vmatprep.subr.mxu0 0.0
    %302 = vmatpush1.msra.mxu0 %v107
    %303 = vmatprep.subr.mxu0 0.0
    %304 = vmatpush1.msra.mxu0 %v106
    %305 = vmatprep.subr.mxu0 0.0
    %306 = vmatpush1.msra.mxu0 %v105
    %307 = vmatprep.subr.mxu0 0.0
    %308 = vmatpush1.msra.mxu0 %v104
    %309 = vmatprep.subr.mxu0 0.0
    %310 = vmatpush1.msra.mxu0 %v103
    %311 = vmatprep.subr.mxu0 0.0
    %312 = vmatpush1.msra.mxu0 %v102
    %313 = vmatprep.subr.mxu0 0.0
    %314 = vmatpush1.msra.mxu0 %v101
    %315 = vmatprep.subr.mxu0 0.0
    %316 = vmatpush1.msra.mxu0 %v100
    %317 = vmatprep.subr.mxu0 0.0
    %318 = vmatpush1.msra.mxu0 %v99
    %319 = vmatprep.subr.mxu0 0.0
    %320 = vmatpush1.msra.mxu0 %v98
    %321 = vmatprep.subr.mxu0 0.0
    %322 = vmatpush1.msra.mxu0 %v97
    %323 = vmatprep.subr.mxu0 0.0
    %324 = vmatpush1.msra.mxu0 %v96
    %325 = vmatprep.subr.mxu0 0.0
    %326 = vmatpush2.msra.mxu0 %v127
    %327 = vmatprep.subr.mxu0 0.0
    %328 = vmatpush2.msra.mxu0 %v126
    %329 = vmatprep.subr.mxu0 0.0
    %330 = vmatpush2.msra.mxu0 %v125
    %331 = vmatprep.subr.mxu0 0.0
    %332 = vmatpush2.msra.mxu0 %v124
    %333 = vmatprep.subr.mxu0 0.0
    %334 = vmatpush2.msra.mxu0 %v123
    %335 = vmatprep.subr.mxu0 0.0
    %336 = vmatpush2.msra.mxu0 %v122
    %337 = vmatprep.subr.mxu0 0.0
    %338 = vmatpush2.msra.mxu0 %v121
    %339 = vmatprep.subr.mxu0 0.0
    %340 = vmatpush2.msra.mxu0 %v120
    %341 = vmatprep.subr.mxu0 0.0
    %342 = vmatpush2.msra.mxu0 %v119
    %343 = vmatprep.subr.mxu0 0.0
    %344 = vmatpush2.msra.mxu0 %v118
    %345 = vmatprep.subr.mxu0 0.0
    %346 = vmatpush2.msra.mxu0 %v117
    %347 = vmatprep.subr.mxu0 0.0
    %348 = vmatpush2.msra.mxu0 %v116
    %349 = vmatprep.subr.mxu0 0.0
    %350 = vmatpush2.msra.mxu0 %v115
    %351 = vmatprep.subr.mxu0 0.0
    %352 = vmatpush2.msra.mxu0 %v114
    %353 = vmatprep.subr.mxu0 0.0
    %354 = vmatpush2.msra.mxu0 %v113
    %355 = vmatprep.subr.mxu0 0.0
    %356 = vmatpush2.msra.mxu0 %v112
    %357 = vmatprep.mubr.f32.mxu0 %v258
    %358 = vmatmul.mubr.f32.gmra.mxu0 %v250
    %v359 = vpop.f32.mrf.mxu0
    %v360 = vadd.f32 0.0, %v359
    %v361 = vpop.f32.mrf.mxu0
    %362 = vdwg.mxu0
    %363 = vmatprep.subr.mxu0 0.0
    %364 = vmatpush1.msra.mxu0 %v143
    %365 = vmatprep.subr.mxu0 0.0
    %366 = vmatpush1.msra.mxu0 %v142
    %367 = vmatprep.subr.mxu0 0.0
    %368 = vmatpush1.msra.mxu0 %v141
    %369 = vmatprep.subr.mxu0 0.0
    %370 = vmatpush1.msra.mxu0 %v140
    %371 = vmatprep.subr.mxu0 0.0
    %372 = vmatpush1.msra.mxu0 %v139
    %373 = vmatprep.subr.mxu0 0.0
    %374 = vmatpush1.msra.mxu0 %v138
    %375 = vmatprep.subr.mxu0 0.0
    %376 = vmatpush1.msra.mxu0 %v137
    %377 = vmatprep.subr.mxu0 0.0
    %378 = vmatpush1.msra.mxu0 %v136
    %379 = vmatprep.subr.mxu0 0.0
    %380 = vmatpush1.msra.mxu0 %v135
    %381 = vmatprep.subr.mxu0 0.0
    %382 = vmatpush1.msra.mxu0 %v134
    %383 = vmatprep.subr.mxu0 0.0
    %384 = vmatpush1.msra.mxu0 %v133
    %385 = vmatprep.subr.mxu0 0.0
    %386 = vmatpush1.msra.mxu0 %v132
    %387 = vmatprep.subr.mxu0 0.0
    %388 = vmatpush1.msra.mxu0 %v131
    %389 = vmatprep.subr.mxu0 0.0
    %390 = vmatpush1.msra.mxu0 %v130
    %391 = vmatprep.subr.mxu0 0.0
    %392 = vmatpush1.msra.mxu0 %v129
    %393 = vmatprep.subr.mxu0 0.0
    %394 = vmatpush1.msra.mxu0 %v128
    %395 = vmatprep.subr.mxu0 0.0
    %396 = vmatpush2.msra.mxu0 %v159
    %397 = vmatprep.subr.mxu0 0.0
    %398 = vmatpush2.msra.mxu0 %v158
    %399 = vmatprep.subr.mxu0 0.0
    %400 = vmatpush2.msra.mxu0 %v157
    %401 = vmatprep.subr.mxu0 0.0
    %402 = vmatpush2.msra.mxu0 %v156
    %403 = vmatprep.subr.mxu0 0.0
    %404 = vmatpush2.msra.mxu0 %v155
    %405 = vmatprep.subr.mxu0 0.0
    %406 = vmatpush2.msra.mxu0 %v154
    %407 = vmatprep.subr.mxu0 0.0
    %408 = vmatpush2.msra.mxu0 %v153
    %409 = vmatprep.subr.mxu0 0.0
    %410 = vmatpush2.msra.mxu0 %v152
    %411 = vmatprep.subr.mxu0 0.0
    %412 = vmatpush2.msra.mxu0 %v151
    %413 = vmatprep.subr.mxu0 0.0
    %414 = vmatpush2.msra.mxu0 %v150
    %415 = vmatprep.subr.mxu0 0.0
    %416 = vmatpush2.msra.mxu0 %v149
    %417 = vmatprep.subr.mxu0 0.0
    %418 = vmatpush2.msra.mxu0 %v148
    %419 = vmatprep.subr.mxu0 0.0
    %420 = vmatpush2.msra.mxu0 %v147
    %421 = vmatprep.subr.mxu0 0.0
    %422 = vmatpush2.msra.mxu0 %v146
    %423 = vmatprep.subr.mxu0 0.0
    %424 = vmatpush2.msra.mxu0 %v145
    %425 = vmatprep.subr.mxu0 0.0
    %426 = vmatpush2.msra.mxu0 %v144
    %427 = vmatprep.mubr.f32.mxu0 %v259
    %428 = vmatmul.mubr.f32.gmra.mxu0 %v257
    %v429 = vpop.f32.mrf.mxu0
    %v430 = vadd.f32 %v360, %v429
    %v431 = vpop.f32.mrf.mxu0
    %432 = vdwg.mxu0
    %433 = vmatprep.subr.mxu0 0.0
    %434 = vmatpush1.msra.mxu0 %v175
    %435 = vmatprep.subr.mxu0 0.0
    %436 = vmatpush1.msra.mxu0 %v174
    %437 = vmatprep.subr.mxu0 0.0
    %438 = vmatpush1.msra.mxu0 %v173
    %439 = vmatprep.subr.mxu0 0.0
    %440 = vmatpush1.msra.mxu0 %v172
    %441 = vmatprep.subr.mxu0 0.0
    %442 = vmatpush1.msra.mxu0 %v171
    %443 = vmatprep.subr.mxu0 0.0
    %444 = vmatpush1.msra.mxu0 %v170
    %445 = vmatprep.subr.mxu0 0.0
    %446 = vmatpush1.msra.mxu0 %v169
    %447 = vmatprep.subr.mxu0 0.0
    %448 = vmatpush1.msra.mxu0 %v168
    %449 = vmatprep.subr.mxu0 0.0
    %450 = vmatpush1.msra.mxu0 %v167
    %451 = vmatprep.subr.mxu0 0.0
    %452 = vmatpush1.msra.mxu0 %v166
    %453 = vmatprep.subr.mxu0 0.0
    %454 = vmatpush1.msra.mxu0 %v165
    %455 = vmatprep.subr.mxu0 0.0
    %456 = vmatpush1.msra.mxu0 %v164
    %457 = vmatprep.subr.mxu0 0.0
    %458 = vmatpush1.msra.mxu0 %v163
    %459 = vmatprep.subr.mxu0 0.0
    %460 = vmatpush1.msra.mxu0 %v162
    %461 = vmatprep.subr.mxu0 0.0
    %462 = vmatpush1.msra.mxu0 %v161
    %463 = vmatprep.subr.mxu0 0.0
    %464 = vmatpush1.msra.mxu0 %v160
    %465 = vmatprep.subr.mxu0 0.0
    %466 = vmatpush2.msra.mxu0 %v191
    %467 = vmatprep.subr.mxu0 0.0
    %468 = vmatpush2.msra.mxu0 %v190
    %469 = vmatprep.subr.mxu0 0.0
    %470 = vmatpush2.msra.mxu0 %v189
    %471 = vmatprep.subr.mxu0 0.0
    %472 = vmatpush2.msra.mxu0 %v188
    %473 = vmatprep.subr.mxu0 0.0
    %474 = vmatpush2.msra.mxu0 %v187
    %475 = vmatprep.subr.mxu0 0.0
    %476 = vmatpush2.msra.mxu0 %v186
    %477 = vmatprep.subr.mxu0 0.0
    %478 = vmatpush2.msra.mxu0 %v185
    %479 = vmatprep.subr.mxu0 0.0
    %480 = vmatpush2.msra.mxu0 %v184
    %481 = vmatprep.subr.mxu0 0.0
    %482 = vmatpush2.msra.mxu0 %v183
    %483 = vmatprep.subr.mxu0 0.0
    %484 = vmatpush2.msra.mxu0 %v182
    %485 = vmatprep.subr.mxu0 0.0
    %486 = vmatpush2.msra.mxu0 %v181
    %487 = vmatprep.subr.mxu0 0.0
    %488 = vmatpush2.msra.mxu0 %v180
    %489 = vmatprep.subr.mxu0 0.0
    %490 = vmatpush2.msra.mxu0 %v179
    %491 = vmatprep.subr.mxu0 0.0
    %492 = vmatpush2.msra.mxu0 %v178
    %493 = vmatprep.subr.mxu0 0.0
    %494 = vmatpush2.msra.mxu0 %v177
    %495 = vmatprep.subr.mxu0 0.0
    %496 = vmatpush2.msra.mxu0 %v176
    %497 = vmatprep.mubr.f32.mxu0 %v275
    %498 = vmatmul.mubr.f32.gmra.mxu0 %v267
    %v499 = vpop.f32.mrf.mxu0
    %v500 = vadd.f32 %v430, %v499
    %v501 = vpop.f32.mrf.mxu0
    %502 = vdwg.mxu0
    %503 = vmatprep.subr.mxu0 0.0
    %504 = vmatpush1.msra.mxu0 %v207
    %505 = vmatprep.subr.mxu0 0.0
    %506 = vmatpush1.msra.mxu0 %v206
    %507 = vmatprep.subr.mxu0 0.0
    %508 = vmatpush1.msra.mxu0 %v205
    %509 = vmatprep.subr.mxu0 0.0
    %510 = vmatpush1.msra.mxu0 %v204
    %511 = vmatprep.subr.mxu0 0.0
    %512 = vmatpush1.msra.mxu0 %v203
    %513 = vmatprep.subr.mxu0 0.0
    %514 = vmatpush1.msra.mxu0 %v202
    %515 = vmatprep.subr.mxu0 0.0
    %516 = vmatpush1.msra.mxu0 %v201
    %517 = vmatprep.subr.mxu0 0.0
    %518 = vmatpush1.msra.mxu0 %v200
    %519 = vmatprep.subr.mxu0 0.0
    %520 = vmatpush1.msra.mxu0 %v199
    %521 = vmatprep.subr.mxu0 0.0
    %522 = vmatpush1.msra.mxu0 %v198
    %523 = vmatprep.subr.mxu0 0.0
    %524 = vmatpush1.msra.mxu0 %v197
    %525 = vmatprep.subr.mxu0 0.0
    %526 = vmatpush1.msra.mxu0 %v196
    %527 = vmatprep.subr.mxu0 0.0
    %528 = vmatpush1.msra.mxu0 %v195
    %529 = vmatprep.subr.mxu0 0.0
    %530 = vmatpush1.msra.mxu0 %v194
    %531 = vmatprep.subr.mxu0 0.0
    %532 = vmatpush1.msra.mxu0 %v193
    %533 = vmatprep.subr.mxu0 0.0
    %534 = vmatpush1.msra.mxu0 %v192
    %535 = vmatprep.subr.mxu0 0.0
    %536 = vmatpush2.msra.mxu0 %v223
    %537 = vmatprep.subr.mxu0 0.0
    %538 = vmatpush2.msra.mxu0 %v222
    %539 = vmatprep.subr.mxu0 0.0
    %540 = vmatpush2.msra.mxu0 %v221
    %541 = vmatprep.subr.mxu0 0.0
    %542 = vmatpush2.msra.mxu0 %v220
    %543 = vmatprep.subr.mxu0 0.0
    %544 = vmatpush2.msra.mxu0 %v219
    %545 = vmatprep.subr.mxu0 0.0
    %546 = vmatpush2.msra.mxu0 %v218
    %547 = vmatprep.subr.mxu0 0.0
    %548 = vmatpush2.msra.mxu0 %v217
    %549 = vmatprep.subr.mxu0 0.0
    %550 = vmatpush2.msra.mxu0 %v216
    %551 = vmatprep.subr.mxu0 0.0
    %552 = vmatpush2.msra.mxu0 %v215
    %553 = vmatprep.subr.mxu0 0.0
    %554 = vmatpush2.msra.mxu0 %v214
    %555 = vmatprep.subr.mxu0 0.0
    %556 = vmatpush2.msra.mxu0 %v213
    %557 = vmatprep.subr.mxu0 0.0
    %558 = vmatpush2.msra.mxu0 %v212
    %559 = vmatprep.subr.mxu0 0.0
    %560 = vmatpush2.msra.mxu0 %v211
    %561 = vmatprep.subr.mxu0 0.0
    %562 = vmatpush2.msra.mxu0 %v210
    %563 = vmatprep.subr.mxu0 0.0
    %564 = vmatpush2.msra.mxu0 %v209
    %565 = vmatprep.subr.mxu0 0.0
    %566 = vmatpush2.msra.mxu0 %v208
    %567 = vmatprep.mubr.f32.mxu0 %v276
    %568 = vmatmul.mubr.f32.gmra.mxu0 %v274
    %v569 = vpop.f32.mrf.mxu0
    %v570 = vadd.f32 %v500, %v569
    %v571 = vpop.f32.mrf.mxu0
    %572 = vdwg.mxu0
    %573 = vmatprep.subr.mxu0 0.0
    %574 = vmatpush1.msra.mxu0 %v239
    %575 = vmatprep.subr.mxu0 0.0
    %576 = vmatpush1.msra.mxu0 %v238
    %577 = vmatprep.subr.mxu0 0.0
    %578 = vmatpush1.msra.mxu0 %v237
    %579 = vmatprep.subr.mxu0 0.0
    %580 = vmatpush1.msra.mxu0 %v236
    %581 = vmatprep.subr.mxu0 0.0
    %582 = vmatpush1.msra.mxu0 %v235
    %583 = vmatprep.subr.mxu0 0.0
    %584 = vmatpush1.msra.mxu0 %v234
    %585 = vmatprep.subr.mxu0 0.0
    %586 = vmatpush1.msra.mxu0 %v233
    %587 = vmatprep.subr.mxu0 0.0
    %588 = vmatpush1.msra.mxu0 %v232
    %589 = vmatprep.subr.mxu0 0.0
    %590 = vmatpush1.msra.mxu0 %v231
    %591 = vmatprep.subr.mxu0 0.0
    %592 = vmatpush1.msra.mxu0 %v230
    %593 = vmatprep.subr.mxu0 0.0
    %594 = vmatpush1.msra.mxu0 %v229
    %595 = vmatprep.subr.mxu0 0.0
    %596 = vmatpush1.msra.mxu0 %v228
    %597 = vmatprep.subr.mxu0 0.0
    %598 = vmatpush1.msra.mxu0 %v227
    %599 = vmatprep.subr.mxu0 0.0
    %600 = vmatpush1.msra.mxu0 %v226
    %601 = vmatprep.subr.mxu0 0.0
    %602 = vmatpush1.msra.mxu0 %v225
    %603 = vmatprep.subr.mxu0 0.0
    %604 = vmatpush1.msra.mxu0 %v224
    %605 = vmatprep.subr.mxu0 0.0
    %606 = vmatpush2.msra.mxu0 0.0
    %607 = vmatprep.subr.mxu0 0.0
    %608 = vmatpush2.msra.mxu0 0.0
    %609 = vmatprep.subr.mxu0 0.0
    %610 = vmatpush2.msra.mxu0 0.0
    %611 = vmatprep.subr.mxu0 0.0
    %612 = vmatpush2.msra.mxu0 0.0
    %613 = vmatprep.subr.mxu0 0.0
    %614 = vmatpush2.msra.mxu0 0.0
    %615 = vmatprep.subr.mxu0 0.0
    %616 = vmatpush2.msra.mxu0 0.0
    %617 = vmatprep.subr.mxu0 0.0
    %618 = vmatpush2.msra.mxu0 0.0
    %619 = vmatprep.subr.mxu0 0.0
    %620 = vmatpush2.msra.mxu0 0.0
    %621 = vmatprep.subr.mxu0 0.0
    %622 = vmatpush2.msra.mxu0 0.0
    %623 = vmatprep.subr.mxu0 0.0
    %624 = vmatpush2.msra.mxu0 0.0
    %625 = vmatprep.subr.mxu0 0.0
    %626 = vmatpush2.msra.mxu0 0.0
    %627 = vmatprep.subr.mxu0 0.0
    %628 = vmatpush2.msra.mxu0 0.0
    %629 = vmatprep.subr.mxu0 0.0
    %630 = vmatpush2.msra.mxu0 0.0
    %631 = vmatprep.subr.mxu0 0.0
    %632 = vmatpush2.msra.mxu0 0.0
    %633 = vmatprep.subr.mxu0 0.0
    %634 = vmatpush2.msra.mxu0 0.0
    %635 = vmatprep.subr.mxu0 0.0
    %636 = vmatpush2.msra.mxu0 0.0
    %637 = vmatprep.mubr.f32.mxu0 0.0
    %638 = vmatmul.mubr.f32.gmra.mxu0 %v283
    %v639 = vpop.f32.mrf.mxu0
    %v640 = vadd.f32 %v570, %v639
    %v641 = vpop.f32.mrf.mxu0
    %642 = vdwg.mxu0
    %v643 = vmul.f32 %v640, %v95
    %v644 = vld [vmem:[%s2] sm:$0x1]
    %v646 = vlaneseq
    %v647 = vshrl.u32 %v646, 7
    %v648 = vsub.s32 0, %v647
    %v649 = vrot.slane %v644, %v648
    %v651 = vadd.f32 %v643, %v649
    %vm652 = vcmask 123904
    %653 = vst.msk [vmem:[#allocation2] sm:$0x3] %vm652, %v651
    // Predicated region
    $region14: #{tpu_custom_call.1} parent=1 // pred_check
      _
    $region15: #{tpu_custom_call.1} parent=1 // pred_check_branch
      %655 = sbr.rel (0) target = $region17
    $region16: #{tpu_custom_call.1} parent=1 // pred_region
      %s657 = ssub.s32 32, 32
      %658 = vsyncadd [#allocation3], %s657
      %s660 = sshll.u32 [#allocation2], 4
      %s661 = int_to_ptr.vmem [resolvable:$true] %s660
      %663 = dma.vmem_to_hbm [thread:$0]  %s661, 32, %s3, [#allocation3]
    $region17: #{tpu_custom_call.1} parent=1 // pred_fallthru
      _
    // Predicated region
    $region18: #{tpu_custom_call.1} parent=1 // pred_check
      _
    $region19: #{tpu_custom_call.1} parent=1 // pred_check_branch
      %665 = sbr.rel (0) target = $region21
    $region20: #{tpu_custom_call.1} parent=1 // pred_region
      %666 = dma.done [#allocation3], 32
    $region21: #{tpu_custom_call.1} parent=1 // pred_fallthru
      _
    %667 = vsyncpa [#allocation3], 1

</llo_original>
